<compile_context>
chip_gen: v5e
topology: v5e:2x2
jax: 0.10.0
libtpu: 0.0.40
codegen_flags: <defaults>
</compile_context>

<pallas_src>
import functools

import jax
import jax.numpy as jnp
from jax import lax
from jax.experimental import pallas as pl
from jax.experimental.pallas import tpu as pltpu

_INV_SQRT2 = 0.7071067811865476


def _geglu_kernel(x_ref, wh_ref, wg_ref, bh_ref, bg_ref, o_ref, acc_h, acc_g,
                  *, k_dim, tk, ragged_k, precision):
    # x_ref: (tm, tk)   wh_ref/wg_ref: (tk, tn)   bh_ref/bg_ref: (1, tn)
    # o_ref: (tm, tn)   acc_h/acc_g:   (tm, tn) f32 scratch
    k = pl.program_id(2)

    @pl.when(k == 0)
    def _():
        # Fold the bias add into the (otherwise idle) accumulator init step.
        acc_h[...] = jnp.broadcast_to(bh_ref[...].astype(jnp.float32), acc_h.shape)
        acc_g[...] = jnp.broadcast_to(bg_ref[...].astype(jnp.float32), acc_g.shape)

    x = x_ref[...]
    wh = wh_ref[...]
    wg = wg_ref[...]

    if ragged_k:
        # The last K block overruns k_dim.  OOB VMEM reads are garbage (possibly
        # NaN/Inf), so zero BOTH operands' out-of-range K slices; zeroing only one
        # side would still give 0 * NaN = NaN in the accumulation.
        k_base = k * tk
        x_cols = k_base + lax.broadcasted_iota(jnp.int32, x.shape, 1)
        x = jnp.where(x_cols < k_dim, x, jnp.zeros_like(x))
        w_rows = k_base + lax.broadcasted_iota(jnp.int32, wh.shape, 0)
        w_valid = w_rows < k_dim
        wh = jnp.where(w_valid, wh, jnp.zeros_like(wh))
        wg = jnp.where(w_valid, wg, jnp.zeros_like(wg))

    acc_h[...] += jnp.dot(x, wh, preferred_element_type=jnp.float32,
                          precision=precision)
    acc_g[...] += jnp.dot(x, wg, preferred_element_type=jnp.float32,
                          precision=precision)

    @pl.when(k == pl.num_programs(2) - 1)
    def _():
        h = acc_h[...]
        g = acc_g[...]
        # Exact (erf-based) GELU, matching torch.nn.functional.gelu's default.
        gelu_g = 0.5 * g * (1.0 + lax.erf(g * _INV_SQRT2))
        # NOTE: rows/cols belonging to partial M/N edge blocks hold garbage
        # (possibly NaN through erf); the masked output store discards them.
        o_ref[...] = (h * gelu_g).astype(o_ref.dtype)


def _pick_k_tile(k_dim):
    """Return (tk, ragged). tk is a multiple of 128 or the full K dim."""
    if k_dim <= 512:
        return k_dim, False
    for cand in (512, 384, 256, 128):
        if k_dim % cand == 0:
            return cand, False
    # No lane-aligned divisor: keep tk=512 and zero-mask the ragged tail
    # in-kernel (never fall back to a full-K block that blows VMEM).
    return 512, True


def _pick_n_tile(n_dim, tn):
    """Return (tn_eff, shared_ok).

    shared_ok means the N tile is lane-aligned and divides dim_out exactly, so the
    joint (K, 2*dim_out) weight can be consumed directly with two column-offset
    BlockSpecs (no host-side split).
    """
    if n_dim <= tn:
        return n_dim, (n_dim % 128 == 0)
    for cand in range(tn, 127, -128):
        if n_dim % cand == 0:
            return cand, True
    return tn, False


@functools.partial(jax.jit, static_argnames=("tm", "tn", "precision"))
def geglu(x, weight, bias, *, tm=1024, tn=512, precision=None):
    """GEGLU forward: out = h * gelu_exact(g), where [h | g] = x @ weight + bias.

    x:      (..., dim_in)              (bf16 inputs recommended for MXU throughput)
    weight: (dim_in, 2*dim_out)        (== torch proj.weight.T)
    bias:   (2*dim_out,)               (== torch proj.bias)
    returns (..., dim_out), same dtype as x.
    """
    orig_shape = x.shape
    k_dim = orig_shape[-1]
    two_n = weight.shape[1]
    assert weight.shape[0] == k_dim and bias.shape == (two_n,)
    assert two_n % 2 == 0
    n_dim = two_n // 2

    x2 = x.reshape(-1, k_dim)
    m_dim = x2.shape[0]

    tk_eff, ragged_k = _pick_k_tile(k_dim)
    tn_eff, shared_ok = _pick_n_tile(n_dim, tn)

    # M tile: full for small M, else `tm`.  If a single (M, N) tile would cover
    # the whole output of a large-M problem, split M so both v7x TensorCores
    # (megacore "parallel" axes) get work.
    tm_eff = m_dim if m_dim <= tm else max(8, (tm // 8) * 8)
    if pl.cdiv(n_dim, tn_eff) == 1 and pl.cdiv(m_dim, tm_eff) == 1 and m_dim >= 1024:
        tm_eff = ((pl.cdiv(m_dim, 2) + 7) // 8) * 8

    grid = (pl.cdiv(m_dim, tm_eff), pl.cdiv(n_dim, tn_eff), pl.cdiv(k_dim, tk_eff))

    if shared_ok:
        # No host-side split: pass the full weight twice with column-offset
        # BlockSpecs (avoids re-materializing two full-weight copies in HBM).
        n_block_off = n_dim // tn_eff
        w_h_arr = weight
        w_g_arr = weight
        b2 = bias.reshape(1, two_n)
        b_h_arr = b2
        b_g_arr = b2
        wg_map = lambda i, j, kk: (kk, j + n_block_off)
        bg_map = lambda i, j, kk: (0, j + n_block_off)
    else:
        # Small / lane-unaligned dim_out: fall back to an explicit split.
        w_h_arr = weight[:, :n_dim]
        w_g_arr = weight[:, n_dim:]
        b_h_arr = bias[:n_dim].reshape(1, n_dim)
        b_g_arr = bias[n_dim:].reshape(1, n_dim)
        wg_map = lambda i, j, kk: (kk, j)
        bg_map = lambda i, j, kk: (0, j)

    kernel = functools.partial(_geglu_kernel, k_dim=k_dim, tk=tk_eff,
                               ragged_k=ragged_k, precision=precision)

    # VMEM budget from the actual tiles/dtypes: double-buffered x / W_h / W_g /
    # out + two f32 accumulators (+ tiny bias blocks), with ~25% headroom.
    in_b = x2.dtype.itemsize
    w_b = weight.dtype.itemsize
    out_b = x.dtype.itemsize
    vmem_needed = (
        2 * tm_eff * tk_eff * in_b          # x (double buffered)
        + 2 * 2 * tk_eff * tn_eff * w_b     # W_h + W_g (double buffered)
        + 2 * tm_eff * tn_eff * out_b       # out (double buffered)
        + 2 * tm_eff * tn_eff * 4           # two f32 accumulators
        + 4 * 2 * tn_eff * 4                # bias blocks
    )
    vmem_limit = int(min(max(vmem_needed * 5 // 4, 32 * 1024 * 1024),
                         128 * 1024 * 1024))

    out2 = pl.pallas_call(
        kernel,
        out_shape=jax.ShapeDtypeStruct((m_dim, n_dim), x.dtype),
        grid_spec=pltpu.PrefetchScalarGridSpec(
            num_scalar_prefetch=0,
            grid=grid,
            in_specs=[
                pl.BlockSpec((tm_eff, tk_eff), lambda i, j, kk: (i, kk)),   # x
                pl.BlockSpec((tk_eff, tn_eff), lambda i, j, kk: (kk, j)),   # W_h
                pl.BlockSpec((tk_eff, tn_eff), wg_map),                     # W_g
                pl.BlockSpec((1, tn_eff), lambda i, j, kk: (0, j)),         # b_h
                pl.BlockSpec((1, tn_eff), bg_map),                          # b_g
            ],
            out_specs=pl.BlockSpec((tm_eff, tn_eff), lambda i, j, kk: (i, j)),
            scratch_shapes=[
                pltpu.VMEM((tm_eff, tn_eff), jnp.float32),
                pltpu.VMEM((tm_eff, tn_eff), jnp.float32),
            ],
        ),
        compiler_params=pltpu.CompilerParams(
            dimension_semantics=("parallel", "parallel", "arbitrary"),
            vmem_limit_bytes=vmem_limit,
        ),
        # If profiling ever shows exposed DMA at output-tile boundaries once
        # compute-bound, add pipeline_mode=pl.Buffered(3) on the x BlockSpec only.
    )(x2, w_h_arr, w_g_arr, b_h_arr, b_g_arr)

    return out2.reshape(orig_shape[:-1] + (n_dim,))


def _reference(x, weight, bias, n_dim):
    proj = (jnp.dot(x.reshape(-1, x.shape[-1]), weight,
                    precision=jax.lax.Precision.HIGHEST) + bias)
    h, g = proj[:, :n_dim], proj[:, n_dim:]
    return (h * jax.nn.gelu(g, approximate=False)).reshape(x.shape[:-1] + (n_dim,))


if __name__ == "__main__":
    key = jax.random.PRNGKey(0)

    # --- Test 1: tiny shapes (exercises the fallback explicit-split path) ---
    B, S, DIM_IN, DIM_OUT = 2, 8, 32, 32
    k1, k2, k3, key = jax.random.split(key, 4)
    x = jax.random.normal(k1, (B, S, DIM_IN), dtype=jnp.float32)
    weight = jax.random.normal(k2, (DIM_IN, 2 * DIM_OUT), dtype=jnp.float32) * (
        1.0 / DIM_IN ** 0.5)
    bias = jax.random.normal(k3, (2 * DIM_OUT,), dtype=jnp.float32) * 0.02

    out = jax.block_until_ready(geglu(x, weight, bias))
    ref = _reference(x, weight, bias, DIM_OUT)
    assert out.shape == (B, S, DIM_OUT) and out.dtype == x.dtype
    err1 = float(jnp.max(jnp.abs(out - ref)))
    assert jnp.allclose(out, ref, atol=1e-2, rtol=1e-2), err1

    # --- Test 2: lane-aligned dim_out (exercises the shared-weight path) ---
    B2, S2, DIM_IN2, DIM_OUT2 = 2, 8, 256, 128
    k1, k2, k3, key = jax.random.split(key, 4)
    x2 = jax.random.normal(k1, (B2, S2, DIM_IN2), dtype=jnp.float32)
    weight2 = jax.random.normal(k2, (DIM_IN2, 2 * DIM_OUT2), dtype=jnp.float32) * (
        1.0 / DIM_IN2 ** 0.5)
    bias2 = jax.random.normal(k3, (2 * DIM_OUT2,), dtype=jnp.float32) * 0.02

    out2 = jax.block_until_ready(geglu(x2, weight2, bias2))
    ref2 = _reference(x2, weight2, bias2, DIM_OUT2)
    assert out2.shape == (B2, S2, DIM_OUT2) and out2.dtype == x2.dtype
    err2 = float(jnp.max(jnp.abs(out2 - ref2)))
    assert jnp.allclose(out2, ref2, atol=1e-2, rtol=1e-2), err2

    print("KERNEL_OK")
</pallas_src>

<mosaic_0001>
module attributes {stable_mosaic.version = 11 : i64} {
  func.func @_geglu_kernel(%arg0: i32, %arg1: i32, %arg2: i32, %arg3: memref<16x32xf32, #tpu.memory_space<vmem>>, %arg4: memref<32x32xf32, #tpu.memory_space<vmem>>, %arg5: memref<32x32xf32, #tpu.memory_space<vmem>>, %arg6: memref<1x32xf32, #tpu.memory_space<vmem>>, %arg7: memref<1x32xf32, #tpu.memory_space<vmem>>, %arg8: memref<16x32xf32, #tpu.memory_space<vmem>>, %arg9: memref<16x32xf32, #tpu.memory_space<vmem>>, %arg10: memref<16x32xf32, #tpu.memory_space<vmem>>) attributes {dimension_semantics = [#tpu.dimension_semantics<parallel>, #tpu.dimension_semantics<parallel>, #tpu.dimension_semantics<arbitrary>], iteration_bounds = array<i64: 1, 1, 1>, scalar_prefetch = 0 : i64, scratch_operands = 2 : i64, tpu.core_type = #tpu.core_type<tc>, window_params = [{transform_indices = @transform_0, window_bounds = array<i64: 16, 32>}, {transform_indices = @transform_1, window_bounds = array<i64: 32, 32>}, {transform_indices = @transform_2, window_bounds = array<i64: 32, 32>}, {transform_indices = @transform_3, window_bounds = array<i64: 1, 32>}, {transform_indices = @transform_4, window_bounds = array<i64: 1, 32>}, {transform_indices = @transform_5, window_bounds = array<i64: 16, 32>}]} {
    %c0_i32 = arith.constant 0 : i32
    %0 = arith.cmpi eq, %arg2, %c0_i32 : i32
    %1 = arith.extui %0 : i1 to i32
    %c0_i32_0 = arith.constant 0 : i32
    %2 = arith.cmpi ne, %1, %c0_i32_0 : i32
    scf.if %2 {
      %c0_17 = arith.constant 0 : index
      %c0_18 = arith.constant 0 : index
      %17 = vector.load %arg6[%c0_17, %c0_18] : memref<1x32xf32, #tpu.memory_space<vmem>>, vector<1x32xf32>
      %18 = vector.shape_cast %17 : vector<1x32xf32> to vector<1x32xf32>
      %19 = vector.broadcast %18 : vector<1x32xf32> to vector<16x32xf32>
      %c0_19 = arith.constant 0 : index
      %c0_20 = arith.constant 0 : index
      %20 = vector.load %arg9[%c0_19, %c0_20] : memref<16x32xf32, #tpu.memory_space<vmem>>, vector<16x32xf32>
      tpu.vector_store %arg9[%c0_19, %c0_20], %19 {strides = array<i32>} : memref<16x32xf32, #tpu.memory_space<vmem>>, vector<16x32xf32>,
      %c0_21 = arith.constant 0 : index
      %c0_22 = arith.constant 0 : index
      %21 = vector.load %arg7[%c0_21, %c0_22] : memref<1x32xf32, #tpu.memory_space<vmem>>, vector<1x32xf32>
      %22 = vector.shape_cast %21 : vector<1x32xf32> to vector<1x32xf32>
      %23 = vector.broadcast %22 : vector<1x32xf32> to vector<16x32xf32>
      %c0_23 = arith.constant 0 : index
      %c0_24 = arith.constant 0 : index
      %24 = vector.load %arg10[%c0_23, %c0_24] : memref<16x32xf32, #tpu.memory_space<vmem>>, vector<16x32xf32>
      tpu.vector_store %arg10[%c0_23, %c0_24], %23 {strides = array<i32>} : memref<16x32xf32, #tpu.memory_space<vmem>>, vector<16x32xf32>,
    } else {
    }
    %c0 = arith.constant 0 : index
    %c0_1 = arith.constant 0 : index
    %3 = vector.load %arg3[%c0, %c0_1] : memref<16x32xf32, #tpu.memory_space<vmem>>, vector<16x32xf32>
    %c0_2 = arith.constant 0 : index
    %c0_3 = arith.constant 0 : index
    %4 = vector.load %arg4[%c0_2, %c0_3] : memref<32x32xf32, #tpu.memory_space<vmem>>, vector<32x32xf32>
    %c0_4 = arith.constant 0 : index
    %c0_5 = arith.constant 0 : index
    %5 = vector.load %arg5[%c0_4, %c0_5] : memref<32x32xf32, #tpu.memory_space<vmem>>, vector<32x32xf32>
    %c0_6 = arith.constant 0 : index
    %c0_7 = arith.constant 0 : index
    %6 = vector.load %arg9[%c0_6, %c0_7] : memref<16x32xf32, #tpu.memory_space<vmem>>, vector<16x32xf32>
    %cst = arith.constant dense<0.000000e+00> : vector<16x32xf32>
    %7 = tpu.matmul %3, %4, %cst {dimension_numbers = #tpu.dot_dimension_numbers<[1], [0], [0], [1], [0, 0, 1, 1], [], []>} : vector<16x32xf32>, vector<32x32xf32>, vector<16x32xf32> -> vector<16x32xf32>
    %8 = arith.addf %6, %7 : vector<16x32xf32>
    %c0_8 = arith.constant 0 : index
    %c0_9 = arith.constant 0 : index
    %9 = vector.load %arg9[%c0_8, %c0_9] : memref<16x32xf32, #tpu.memory_space<vmem>>, vector<16x32xf32>
    tpu.vector_store %arg9[%c0_8, %c0_9], %8 {strides = array<i32>} : memref<16x32xf32, #tpu.memory_space<vmem>>, vector<16x32xf32>,
    %c0_10 = arith.constant 0 : index
    %c0_11 = arith.constant 0 : index
    %10 = vector.load %arg10[%c0_10, %c0_11] : memref<16x32xf32, #tpu.memory_space<vmem>>, vector<16x32xf32>
    %cst_12 = arith.constant dense<0.000000e+00> : vector<16x32xf32>
    %11 = tpu.matmul %3, %5, %cst_12 {dimension_numbers = #tpu.dot_dimension_numbers<[1], [0], [0], [1], [0, 0, 1, 1], [], []>} : vector<16x32xf32>, vector<32x32xf32>, vector<16x32xf32> -> vector<16x32xf32>
    %12 = arith.addf %10, %11 : vector<16x32xf32>
    %c0_13 = arith.constant 0 : index
    %c0_14 = arith.constant 0 : index
    %13 = vector.load %arg10[%c0_13, %c0_14] : memref<16x32xf32, #tpu.memory_space<vmem>>, vector<16x32xf32>
    tpu.vector_store %arg10[%c0_13, %c0_14], %12 {strides = array<i32>} : memref<16x32xf32, #tpu.memory_space<vmem>>, vector<16x32xf32>,
    %c0_i32_15 = arith.constant 0 : i32
    %14 = arith.cmpi eq, %arg2, %c0_i32_15 : i32
    %15 = arith.extui %14 : i1 to i32
    %c0_i32_16 = arith.constant 0 : i32
    %16 = arith.cmpi ne, %15, %c0_i32_16 : i32
    scf.if %16 {
      %c0_17 = arith.constant 0 : index
      %c0_18 = arith.constant 0 : index
      %17 = vector.load %arg9[%c0_17, %c0_18] : memref<16x32xf32, #tpu.memory_space<vmem>>, vector<16x32xf32>
      %c0_19 = arith.constant 0 : index
      %c0_20 = arith.constant 0 : index
      %18 = vector.load %arg10[%c0_19, %c0_20] : memref<16x32xf32, #tpu.memory_space<vmem>>, vector<16x32xf32>
      %cst_21 = arith.constant 5.000000e-01 : f32
      %19 = vector.broadcast %cst_21 : f32 to vector<16x32xf32>
      %20 = arith.mulf %19, %18 : vector<16x32xf32>
      %cst_22 = arith.constant 0.707106769 : f32
      %21 = vector.broadcast %cst_22 : f32 to vector<16x32xf32>
      %22 = arith.mulf %18, %21 : vector<16x32xf32>
      %23 = math.erf %22 : vector<16x32xf32>
      %cst_23 = arith.constant 1.000000e+00 : f32
      %24 = vector.broadcast %cst_23 : f32 to vector<16x32xf32>
      %25 = arith.addf %24, %23 : vector<16x32xf32>
      %26 = arith.mulf %20, %25 : vector<16x32xf32>
      %27 = arith.mulf %17, %26 : vector<16x32xf32>
      %c0_24 = arith.constant 0 : index
      %c0_25 = arith.constant 0 : index
      %28 = vector.load %arg8[%c0_24, %c0_25] : memref<16x32xf32, #tpu.memory_space<vmem>>, vector<16x32xf32>
      tpu.vector_store %arg8[%c0_24, %c0_25], %27 {strides = array<i32>} : memref<16x32xf32, #tpu.memory_space<vmem>>, vector<16x32xf32>,
    } else {
    }
    return
  }
  func.func @transform_0(%arg0: i32, %arg1: i32, %arg2: i32) -> (i32, i32) {
    %c0_i32 = arith.constant 0 : i32
    return %arg0, %arg2 : i32, i32
  }
  func.func @transform_1(%arg0: i32, %arg1: i32, %arg2: i32) -> (i32, i32) {
    %c0_i32 = arith.constant 0 : i32
    return %arg2, %arg1 : i32, i32
  }
  func.func @transform_2(%arg0: i32, %arg1: i32, %arg2: i32) -> (i32, i32) {
    %c0_i32 = arith.constant 0 : i32
    return %arg2, %arg1 : i32, i32
  }
  func.func @transform_3(%arg0: i32, %arg1: i32, %arg2: i32) -> (i32, i32) {
    %c0_i32 = arith.constant 0 : i32
    %c0_i32_0 = arith.constant 0 : i32
    return %c0_i32, %arg1 : i32, i32
  }
  func.func @transform_4(%arg0: i32, %arg1: i32, %arg2: i32) -> (i32, i32) {
    %c0_i32 = arith.constant 0 : i32
    %c0_i32_0 = arith.constant 0 : i32
    return %c0_i32, %arg1 : i32, i32
  }
  func.func @transform_5(%arg0: i32, %arg1: i32, %arg2: i32) -> (i32, i32) {
    %c0_i32 = arith.constant 0 : i32
    return %arg0, %arg1 : i32, i32
  }
}

</mosaic_0001>

<llo_original>
// kernel: geglu.1
$region0: #{geglu.1}
  #allocation0 [shape = 'u32[]', space=smem, size = 0x4, offset = 0x4, fixed_abs, tag = 'smem constant byte address 0x4 - core index']
  #allocation1 [shape = 'u32[72,128]{1,0:T(1,128)}', space=vmem, size = 0x9000, scoped, tag = 'internal scratch']
  #allocation2 [shape = 'f32[16,32]{1,0:T(8,128)}', space=vmem, size = 0x2000, scoped, tag = 'scratch operand']
  #allocation3 [shape = 'f32[16,32]{1,0:T(8,128)}', space=vmem, size = 0x2000, scoped, tag = 'scratch operand']
  %s0 = inlined_call_operand.vmem [shape: f32[16,32], index: 0, kind: input, shape index: {}]
  %s1 = inlined_call_operand.vmem [shape: f32[32,32], index: 1, kind: input, shape index: {}]
  %s2 = inlined_call_operand.vmem [shape: f32[32,32], index: 2, kind: input, shape index: {}]
  %s3 = inlined_call_operand.vmem [shape: f32[1,32], index: 3, kind: input, shape index: {}]
  %s4 = inlined_call_operand.vmem [shape: f32[1,32], index: 4, kind: input, shape index: {}]
  %s5 = inlined_call_operand.hbm [shape: f32[16,32], index: 5, kind: output, shape index: {}]
  %s6 = sld [smem:[#allocation0]]
  $region38: #{geglu.1} parent=0
    _
  %s8 = ssub.s32 1, %s6
  %s9 = scalar_select 0, %s8, %s6
  $region1: #{geglu.1} parent=0
    #allocation4 [shape = 'u8[8192]{0}', space=vmem, size = 0x2000, scoped, tag = 'output window, operand 0, single buffered']
    #allocation5 [shape = 's32[1]{0}', space=sflag, size = 0x4, scoped, tag = 'scoped memory for geglu.1']
    %10 = vsyncpa [#allocation5], 0
    // Predicated region
    $region2: #{geglu.1} parent=1 // pred_check
      _
    $region3: #{geglu.1} parent=1 // pred_check_branch
      %12 = sbr.rel (0) target = $region5
    $region4: #{geglu.1} parent=1 // pred_region
      _
    $region5: #{geglu.1} parent=1 // pred_fallthru
      _
    // Predicated region
    $region6: #{geglu.1} parent=1 // pred_check
      _
    $region7: #{geglu.1} parent=1 // pred_check_branch
      %14 = sbr.rel (0) target = $region9
    $region8: #{geglu.1} parent=1 // pred_region
      _
    $region9: #{geglu.1} parent=1 // pred_fallthru
      _
    // Predicated region
    $region10: #{geglu.1} parent=1 // pred_check
      _
    $region11: #{geglu.1} parent=1 // pred_check_branch
      %16 = sbr.rel (0) target = $region13
    $region12: #{geglu.1} parent=1 // pred_region
      _
    $region13: #{geglu.1} parent=1 // pred_fallthru
      _
    // Predicated region
    $region14: #{geglu.1} parent=1 // pred_check
      _
    $region15: #{geglu.1} parent=1 // pred_check_branch
      %18 = sbr.rel (0) target = $region17
    $region16: #{geglu.1} parent=1 // pred_region
      _
    $region17: #{geglu.1} parent=1 // pred_fallthru
      _
    // Predicated region
    $region18: #{geglu.1} parent=1 // pred_check
      _
    $region19: #{geglu.1} parent=1 // pred_check_branch
      %20 = sbr.rel (0) target = $region21
    $region20: #{geglu.1} parent=1 // pred_region
      _
    $region21: #{geglu.1} parent=1 // pred_fallthru
      _
    %p21 = scmp.eq.s32.totalorder 0, 0
    // Predicated region
    $region22: #{geglu.1} parent=1 // pred_check
      %p22 = pneg %p21
    $region23: #{geglu.1} parent=1 // pred_check_branch
      %24 = sbr.rel (%p22) target = $region25
    $region24: #{geglu.1} parent=1 // pred_region
      %v25 = vld [vmem:[%s3] sm:$0x1]
      %v27 = vperm.slane %v25, 0
      %vm29 = vcmask 261120
      %30 = vst.msk [vmem:[#allocation2] sm:$0xff] %vm29, %v27
      %31 = vst.msk [vmem:[#allocation2 + $0x8] sm:$0xff] %vm29, %v27
      %v32 = vld [vmem:[%s4] sm:$0x1]
      %v34 = vperm.slane %v32, 0
      %36 = vst.msk [vmem:[#allocation3] sm:$0xff] %vm29, %v34
      %37 = vst.msk [vmem:[#allocation3 + $0x8] sm:$0xff] %vm29, %v34
    $region25: #{geglu.1} parent=1 // pred_fallthru
      _
    %v38 = vld [vmem:[%s0] sm:$0xff]
    %v39 = vld [vmem:[%s0 + $0x8] sm:$0xff]
    %v40 = vld [vmem:[%s1] sm:$0xff]
    %v41 = vld [vmem:[%s1 + $0x8] sm:$0xff]
    %v42 = vld [vmem:[%s1 + $0x10] sm:$0xff]
    %v43 = vld [vmem:[%s1 + $0x18] sm:$0xff]
    %v44 = vld [vmem:[%s2] sm:$0xff]
    %v45 = vld [vmem:[%s2 + $0x8] sm:$0xff]
    %v46 = vld [vmem:[%s2 + $0x10] sm:$0xff]
    %v47 = vld [vmem:[%s2 + $0x18] sm:$0xff]
    %v48 = vld [vmem:[#allocation2] sm:$0xff]
    %v49 = vld [vmem:[#allocation2 + $0x8] sm:$0xff]
    %vm50 = vcmask 261120
    %v52 = vsel %vm50, %v38, 0
    %v55 = vsel %vm50, %v39, 0
    %57 = vmatpush.msra.mxu0 0.0
    %58 = vmatpush.msra.mxu0 0.0
    %59 = vmatpush.msra.mxu0 0.0
    %60 = vmatpush.msra.mxu0 0.0
    %61 = vmatpush.msra.mxu0 0.0
    %62 = vmatpush.msra.mxu0 0.0
    %63 = vmatpush.msra.mxu0 0.0
    %64 = vmatpush.msra.mxu0 0.0
    %65 = vmatpush.msra.mxu0 0.0
    %66 = vmatpush.msra.mxu0 0.0
    %67 = vmatpush.msra.mxu0 0.0
    %68 = vmatpush.msra.mxu0 0.0
    %69 = vmatpush.msra.mxu0 %v43
    %70 = vmatpush.msra.mxu0 %v42
    %71 = vmatpush.msra.mxu0 %v41
    %72 = vmatpush.msra.mxu0 %v40
    %73 = vmatmul.f32.gmra.mxu0 %v52
    %v74 = vpop.f32.mrf.mxu0
    %v75 = vadd.f32 0.0, %v74
    %76 = vmatmul.f32.gmra.mxu0 %v55
    %v77 = vpop.f32.mrf.mxu0
    %v78 = vadd.f32 0.0, %v77
    %79 = vdwg.mxu0
    %v80 = vadd.f32 %v48, %v75
    %v81 = vadd.f32 %v49, %v78
    %82 = vst.msk [vmem:[#allocation2] sm:$0xff] %vm50, %v80
    %83 = vst.msk [vmem:[#allocation2 + $0x8] sm:$0xff] %vm50, %v81
    %v84 = vld [vmem:[#allocation3] sm:$0xff]
    %v85 = vld [vmem:[#allocation3 + $0x8] sm:$0xff]
    %86 = vmatpush.msra.mxu0 0.0
    %87 = vmatpush.msra.mxu0 0.0
    %88 = vmatpush.msra.mxu0 0.0
    %89 = vmatpush.msra.mxu0 0.0
    %90 = vmatpush.msra.mxu0 0.0
    %91 = vmatpush.msra.mxu0 0.0
    %92 = vmatpush.msra.mxu0 0.0
    %93 = vmatpush.msra.mxu0 0.0
    %94 = vmatpush.msra.mxu0 0.0
    %95 = vmatpush.msra.mxu0 0.0
    %96 = vmatpush.msra.mxu0 0.0
    %97 = vmatpush.msra.mxu0 0.0
    %98 = vmatpush.msra.mxu0 %v47
    %99 = vmatpush.msra.mxu0 %v46
    %100 = vmatpush.msra.mxu0 %v45
    %101 = vmatpush.msra.mxu0 %v44
    %102 = vmatmul.f32.gmra.mxu0 %v52
    %v103 = vpop.f32.mrf.mxu0
    %v104 = vadd.f32 0.0, %v103
    %105 = vmatmul.f32.gmra.mxu0 %v55
    %v106 = vpop.f32.mrf.mxu0
    %v107 = vadd.f32 0.0, %v106
    %108 = vdwg.mxu0
    %v109 = vadd.f32 %v84, %v104
    %v110 = vadd.f32 %v85, %v107
    %111 = vst.msk [vmem:[#allocation3] sm:$0xff] %vm50, %v109
    %112 = vst.msk [vmem:[#allocation3 + $0x8] sm:$0xff] %vm50, %v110
    // Predicated region
    $region26: #{geglu.1} parent=1 // pred_check
      %p113 = pneg %p21
    $region27: #{geglu.1} parent=1 // pred_check_branch
      %115 = sbr.rel (%p113) target = $region29
    $region28: #{geglu.1} parent=1 // pred_region
      %v116 = vld [vmem:[#allocation2] sm:$0xff]
      %v117 = vld [vmem:[#allocation2 + $0x8] sm:$0xff]
      %v118 = vld [vmem:[#allocation3] sm:$0xff]
      %v119 = vld [vmem:[#allocation3 + $0x8] sm:$0xff]
      %v120 = vmul.f32 %v118, 0.5
      %v121 = vmul.f32 %v119, 0.5
      %v122 = vmul.f32 %v118, 0.70710677
      %v123 = vmul.f32 %v119, 0.70710677
      %v124 = vmul.f32 %v122, %v122
      %v125 = vmin.f32 16.0, %v124
      %v126 = vmul.f32 %v125, 2.1237322e-06
      %v127 = vadd.f32 %v126, 0.00028619796
      %v128 = vmul.f32 %v125, %v127
      %v129 = vadd.f32 %v128, 0.0036580483
      %v130 = vmul.f32 %v125, %v129
      %v131 = vadd.f32 %v130, 0.05243302
      %v132 = vmul.f32 %v125, %v131
      %v133 = vadd.f32 %v132, 0.18741608
      %v134 = vmul.f32 %v125, %v133
      %v135 = vadd.f32 %v134, 1.1283791
      %v136 = vmul.f32 %v122, %v135
      %v137 = vmul.f32 %v125, 3.8918573e-05
      %v138 = vadd.f32 %v137, 0.001143296
      %v139 = vmul.f32 %v125, %v138
      %v140 = vadd.f32 %v139, 0.014752088
      %v141 = vmul.f32 %v125, %v140
      %v142 = vadd.f32 %v141, 0.112945676
      %v143 = vmul.f32 %v125, %v142
      %v144 = vadd.f32 %v143, 0.4994258
      %v145 = vmul.f32 %v125, %v144
      %v146 = vadd.f32 %v145, 1.0
      %v147 = vrcp.pop %v146
      %v148 = vmul.f32 %v146, %v147
      %v149 = vsub.f32 1.0, %v148
      %v150 = vmul.f32 %v147, %v149
      %v151 = vadd.f32 %v147, %v150
      %vm152 = vweird.f32 %v146
      %vm153 = vweird.f32 %v147
      %vm154 = vmor %vm152, %vm153
      %v155 = vsel %vm154, %v147, %v151
      %v156 = vand.u32 2147483647, %v146
      %vm157 = vcmp.eq.f32.partialorder %v156, 8.507059e+37
      %v158 = vand.u32 %v146, 2147483648
      %v159 = vor.u32 1.1754944e-38, %v158
      %v160 = vsel %vm157, %v159, %v155
      %v161 = vmul.f32 %v136, %v160
      %v162 = vmin.f32 %v161, 1.0
      %v163 = vmax.f32 %v162, -1.0
      %v164 = vmul.f32 %v123, %v123
      %v165 = vmin.f32 16.0, %v164
      %v166 = vmul.f32 %v165, 2.1237322e-06
      %v167 = vadd.f32 %v166, 0.00028619796
      %v168 = vmul.f32 %v165, %v167
      %v169 = vadd.f32 %v168, 0.0036580483
      %v170 = vmul.f32 %v165, %v169
      %v171 = vadd.f32 %v170, 0.05243302
      %v172 = vmul.f32 %v165, %v171
      %v173 = vadd.f32 %v172, 0.18741608
      %v174 = vmul.f32 %v165, %v173
      %v175 = vadd.f32 %v174, 1.1283791
      %v176 = vmul.f32 %v123, %v175
      %v177 = vmul.f32 %v165, 3.8918573e-05
      %v178 = vadd.f32 %v177, 0.001143296
      %v179 = vmul.f32 %v165, %v178
      %v180 = vadd.f32 %v179, 0.014752088
      %v181 = vmul.f32 %v165, %v180
      %v182 = vadd.f32 %v181, 0.112945676
      %v183 = vmul.f32 %v165, %v182
      %v184 = vadd.f32 %v183, 0.4994258
      %v185 = vmul.f32 %v165, %v184
      %v186 = vadd.f32 %v185, 1.0
      %v187 = vrcp.pop %v186
      %v188 = vmul.f32 %v186, %v187
      %v189 = vsub.f32 1.0, %v188
      %v190 = vmul.f32 %v187, %v189
      %v191 = vadd.f32 %v187, %v190
      %vm192 = vweird.f32 %v186
      %vm193 = vweird.f32 %v187
      %vm194 = vmor %vm192, %vm193
      %v195 = vsel %vm194, %v187, %v191
      %v196 = vand.u32 2147483647, %v186
      %vm197 = vcmp.eq.f32.partialorder %v196, 8.507059e+37
      %v198 = vand.u32 %v186, 2147483648
      %v199 = vor.u32 1.1754944e-38, %v198
      %v200 = vsel %vm197, %v199, %v195
      %v201 = vmul.f32 %v176, %v200
      %v202 = vmin.f32 %v201, 1.0
      %v203 = vmax.f32 %v202, -1.0
      %v204 = vadd.f32 %v163, 1.0
      %v205 = vadd.f32 %v203, 1.0
      %v206 = vmul.f32 %v120, %v204
      %v207 = vmul.f32 %v121, %v205
      %v208 = vmul.f32 %v116, %v206
      %v209 = vmul.f32 %v117, %v207
      %210 = vst.msk [vmem:[#allocation4] sm:$0xff] %vm50, %v208
      %211 = vst.msk [vmem:[#allocation4 + $0x8] sm:$0xff] %vm50, %v209
    $region29: #{geglu.1} parent=1 // pred_fallthru
      _
    // Predicated region
    $region30: #{geglu.1} parent=1 // pred_check
      _
    $region31: #{geglu.1} parent=1 // pred_check_branch
      %213 = sbr.rel (0) target = $region33
    $region32: #{geglu.1} parent=1 // pred_region
      %215 = vsyncadd [#allocation5], 0
      %s216 = sshll.u32 [#allocation4], 4
      %s217 = int_to_ptr.vmem [resolvable:$true] %s216
      %s218 = sshll.u32 %s5, 4
      %s219 = int_to_ptr.hbm [resolvable:$true] %s218
      %224 = dma.vmem_to_hbm [thread:$0]  %s217, 256, %s219, [#allocation5], 128, 128, 8
    $region33: #{geglu.1} parent=1 // pred_fallthru
      _
    // Predicated region
    $region34: #{geglu.1} parent=1 // pred_check
      _
    $region35: #{geglu.1} parent=1 // pred_check_branch
      %226 = sbr.rel (0) target = $region37
    $region36: #{geglu.1} parent=1 // pred_region
      %228 = dma.done [#allocation5], 256
    $region37: #{geglu.1} parent=1 // pred_fallthru
      _
    %229 = vsyncpa [#allocation5], 1

</llo_original>
